<compile_context>
chip_gen: v6e
topology: v6e:2x2x1
jax: 0.10.0
libtpu: 0.0.40
codegen_flags: <defaults>
</compile_context>

<pallas_src>
import functools

import jax
import jax.numpy as jnp
from jax.experimental import pallas as pl
from jax.experimental.pallas import tpu as pltpu


def _round_up(a: int, b: int) -> int:
    return (a + b - 1) // b * b


def anfis_kernel(xt_ref, w_ref, m_ref, o_ref):
    xt = xt_ref[...]          # (n_inputs, TB)       f32, batch on lanes
    w = w_ref[...]            # (n_rules, n_inputs)  f32
    m = m_ref[...]            # (n_rules, 1)         f32

    # reglas^T = pesos @ x^T -> (n_rules, TB); contraction over n_inputs feeds
    # the MXU directly (w lanes x xt sublanes), no operand transpose.
    reglas = jnp.dot(w, xt, preferred_element_type=jnp.float32)

    # Numerically-stable softmax over the rules axis (axis 0 here), fused with
    # the membresia matvec: softmax(r) @ m = sum(e*m) / sum(e), e = exp(r-max).
    mx = jnp.max(reglas, axis=0, keepdims=True)        # (1, TB)
    e = jnp.exp(reglas - mx)                           # (n_rules, TB)
    den = jnp.sum(e, axis=0, keepdims=True)            # (1, TB)
    num = jnp.sum(e * m, axis=0, keepdims=True)        # (1, TB)

    z = num * pl.reciprocal(den, approx=True)          # (1, TB)
    # sigmoid(z) = 1 / (1 + exp(-z)); reciprocal on the (otherwise idle) EUP.
    o_ref[...] = pl.reciprocal(1.0 + jnp.exp(-z), approx=True).astype(o_ref.dtype)


@functools.partial(jax.jit, static_argnames=("max_block_b",))
def anfis_forward(x, pesos, membresia, *, max_block_b=512):
    """x: (B, n_inputs); pesos: (n_rules, n_inputs); membresia: (n_rules, 1)."""
    B, n_inputs = x.shape
    n_rules = pesos.shape[0]

    x = x.astype(jnp.float32)
    pesos = pesos.astype(jnp.float32)
    membresia = membresia.astype(jnp.float32)

    # Batch tile: multiple of 128 (it is the lane axis), capped so that the
    # double-buffered x^T tiles + the (n_rules, TB) intermediate stay well
    # inside scoped VMEM on v5e (16 MiB) / v6e (32 MiB) / v7x (32 MiB scoped).
    tb = min(max_block_b, _round_up(B, 128))
    b_pad = _round_up(B, tb)
    grid = b_pad // tb

    # Present x with batch on lanes; padded columns are zeros (they produce a
    # finite sigmoid value and are sliced away below).
    x_t = jnp.transpose(x)                              # (n_inputs, B)
    if b_pad != B:
        x_t = jnp.pad(x_t, ((0, 0), (0, b_pad - B)))

    cost = pl.CostEstimate(
        flops=2 * B * n_inputs * n_rules,
        transcendentals=B * n_rules + B,
        bytes_accessed=4 * (B * n_inputs + n_rules * n_inputs + n_rules + B),
    )

    out = pl.pallas_call(
        anfis_kernel,
        out_shape=jax.ShapeDtypeStruct((1, b_pad), jnp.float32),
        grid=(grid,),
        in_specs=[
            # x^T batch tile (n_inputs, TB); a new tile each grid step.
            pl.BlockSpec((n_inputs, tb), lambda i: (0, i)),
            # Weights: constant index maps -> VMEM-resident across the grid.
            pl.BlockSpec((n_rules, n_inputs), lambda i: (0, 0)),
            pl.BlockSpec((n_rules, 1), lambda i: (0, 0)),
        ],
        out_specs=pl.BlockSpec((1, tb), lambda i: (0, i)),
        compiler_params=pltpu.CompilerParams(
            dimension_semantics=("parallel",),
        ),
        cost_estimate=cost,
    )(x_t, pesos, membresia)

    # Lane-dense (1, B_pad) row -> (B, 1) column expected by the module.
    return out[0, :B].reshape(B, 1)


def anfis_reference(x, pesos, membresia):
    reglas = x @ pesos.T
    reglas = jax.nn.softmax(reglas, axis=1)
    memb = reglas @ membresia
    return jax.nn.sigmoid(memb)


if __name__ == "__main__":
    key = jax.random.PRNGKey(0)
    k_x, k_w, k_m = jax.random.split(key, 3)

    batch = 8
    n_inputs = 16
    n_rules = 32

    x = jax.random.normal(k_x, (batch, n_inputs), dtype=jnp.float32)
    pesos = jax.random.normal(k_w, (n_rules, n_inputs), dtype=jnp.float32)
    membresia = jax.random.normal(k_m, (n_rules, 1), dtype=jnp.float32)

    out = anfis_forward(x, pesos, membresia)
    out = jax.block_until_ready(out)

    ref = anfis_reference(x, pesos, membresia)
    assert out.shape == (batch, 1), out.shape
    max_err = jnp.max(jnp.abs(out - ref))
    # approx=True reciprocals (EUP path) -> ~1e-3-level error budget.
    assert jnp.allclose(out, ref, atol=5e-3, rtol=0.0), f"max abs err {max_err}"

    print("KERNEL_OK")
</pallas_src>

<mosaic_0001>
module attributes {stable_mosaic.version = 11 : i64} {
  func.func @anfis_kernel(%arg0: i32, %arg1: memref<16x128xf32, #tpu.memory_space<vmem>>, %arg2: memref<32x16xf32, #tpu.memory_space<vmem>>, %arg3: memref<32x1xf32, #tpu.memory_space<vmem>>, %arg4: memref<1x128xf32, #tpu.memory_space<vmem>>) attributes {dimension_semantics = [#tpu.dimension_semantics<parallel>], iteration_bounds = array<i64: 1>, scalar_prefetch = 0 : i64, scratch_operands = 0 : i64, tpu.core_type = #tpu.core_type<tc>, window_params = [{transform_indices = @transform_0, window_bounds = array<i64: 16, 128>}, {pipeline_mode = #tpu.pipeline_mode<synchronous>, transform_indices = @transform_1, window_bounds = array<i64: 32, 16>}, {pipeline_mode = #tpu.pipeline_mode<synchronous>, transform_indices = @transform_2, window_bounds = array<i64: 32, 1>}, {transform_indices = @transform_3, window_bounds = array<i64: 1, 128>}]} {
    %c0 = arith.constant 0 : index
    %c0_0 = arith.constant 0 : index
    %0 = vector.load %arg1[%c0, %c0_0] : memref<16x128xf32, #tpu.memory_space<vmem>>, vector<16x128xf32>
    %c0_1 = arith.constant 0 : index
    %c0_2 = arith.constant 0 : index
    %1 = vector.load %arg2[%c0_1, %c0_2] : memref<32x16xf32, #tpu.memory_space<vmem>>, vector<32x16xf32>
    %c0_3 = arith.constant 0 : index
    %c0_4 = arith.constant 0 : index
    %2 = vector.load %arg3[%c0_3, %c0_4] : memref<32x1xf32, #tpu.memory_space<vmem>>, vector<32x1xf32>
    %cst = arith.constant dense<0.000000e+00> : vector<32x128xf32>
    %3 = tpu.matmul %1, %0, %cst {dimension_numbers = #tpu.dot_dimension_numbers<[1], [0], [0], [1], [0, 0, 1, 1], [], []>} : vector<32x16xf32>, vector<16x128xf32>, vector<32x128xf32> -> vector<32x128xf32>
    %cst_5 = arith.constant dense<0xFF800000> : vector<128xf32>
    %4 = vector.multi_reduction <maximumf>, %3, %cst_5 [0] : vector<32x128xf32> to vector<128xf32>
    %5 = vector.shape_cast %4 : vector<128xf32> to vector<1x128xf32>
    %6 = vector.broadcast %5 : vector<1x128xf32> to vector<32x128xf32>
    %7 = arith.subf %3, %6 : vector<32x128xf32>
    %8 = math.exp %7 : vector<32x128xf32>
    %cst_6 = arith.constant dense<0.000000e+00> : vector<128xf32>
    %9 = vector.multi_reduction <add>, %8, %cst_6 [0] : vector<32x128xf32> to vector<128xf32>
    %10 = vector.shape_cast %9 : vector<128xf32> to vector<1x128xf32>
    %11 = vector.broadcast %2 : vector<32x1xf32> to vector<32x128xf32>
    %12 = arith.mulf %8, %11 : vector<32x128xf32>
    %cst_7 = arith.constant dense<0.000000e+00> : vector<128xf32>
    %13 = vector.multi_reduction <add>, %12, %cst_7 [0] : vector<32x128xf32> to vector<128xf32>
    %14 = vector.shape_cast %13 : vector<128xf32> to vector<1x128xf32>
    %15 = tpu.reciprocal %10 {approx = true} : vector<1x128xf32> -> vector<1x128xf32>
    %16 = arith.mulf %14, %15 : vector<1x128xf32>
    %cst_8 = arith.constant 0.000000e+00 : f32
    %17 = vector.broadcast %cst_8 : f32 to vector<1x128xf32>
    %18 = arith.subf %17, %16 : vector<1x128xf32>
    %19 = math.exp %18 : vector<1x128xf32>
    %cst_9 = arith.constant 1.000000e+00 : f32
    %20 = vector.broadcast %cst_9 : f32 to vector<1x128xf32>
    %21 = arith.addf %20, %19 : vector<1x128xf32>
    %22 = tpu.reciprocal %21 {approx = true} : vector<1x128xf32> -> vector<1x128xf32>
    %c0_10 = arith.constant 0 : index
    %c0_11 = arith.constant 0 : index
    %23 = vector.load %arg4[%c0_10, %c0_11] : memref<1x128xf32, #tpu.memory_space<vmem>>, vector<1x128xf32>
    tpu.vector_store %arg4[%c0_10, %c0_11], %22 {strides = array<i32>} : memref<1x128xf32, #tpu.memory_space<vmem>>, vector<1x128xf32>,
    return
  }
  func.func @transform_0(%arg0: i32) -> (i32, i32) {
    %c0_i32 = arith.constant 0 : i32
    %c0_i32_0 = arith.constant 0 : i32
    return %c0_i32, %arg0 : i32, i32
  }
  func.func @transform_1(%arg0: i32) -> (i32, i32) {
    %c0_i32 = arith.constant 0 : i32
    %c0_i32_0 = arith.constant 0 : i32
    %c0_i32_1 = arith.constant 0 : i32
    return %c0_i32, %c0_i32_0 : i32, i32
  }
  func.func @transform_2(%arg0: i32) -> (i32, i32) {
    %c0_i32 = arith.constant 0 : i32
    %c0_i32_0 = arith.constant 0 : i32
    %c0_i32_1 = arith.constant 0 : i32
    return %c0_i32, %c0_i32_0 : i32, i32
  }
  func.func @transform_3(%arg0: i32) -> (i32, i32) {
    %c0_i32 = arith.constant 0 : i32
    %c0_i32_0 = arith.constant 0 : i32
    return %c0_i32, %arg0 : i32, i32
  }
}

</mosaic_0001>

<llo_original>
// kernel: anfis_forward.1
$region0: #{anfis_forward.1}
  #allocation0 [shape = 'u32[]', space=smem, size = 0x4, offset = 0x4, fixed_abs, tag = 'smem constant byte address 0x4 - core index']
  #allocation1 [shape = 'u32[144,128]{1,0:T(1,128)}', space=vmem, size = 0x12000, scoped, tag = 'internal scratch']
  %s0 = inlined_call_operand.vmem [shape: f32[16,128], index: 0, kind: input, shape index: {}]
  %s1 = inlined_call_operand.vmem [shape: f32[32,16], index: 1, kind: input, shape index: {}]
  %s2 = inlined_call_operand.vmem [shape: f32[32,1], index: 2, kind: input, shape index: {}]
  %s3 = inlined_call_operand.vmem [shape: f32[1,128], index: 3, kind: output, shape index: {}]
  %s4 = sld [smem:[#allocation0]]
  $region22: #{anfis_forward.1} parent=0
    _
  %s6 = ssub.s32 1, %s4
  %s7 = scalar_select 0, %s6, %s4
  // Predicated region
  $region2: #{anfis_forward.1} parent=0 // pred_check
    _
  $region3: #{anfis_forward.1} parent=0 // pred_check_branch
    %9 = sbr.rel (0) target = $region5
  $region4: #{anfis_forward.1} parent=0 // pred_region
    _
  $region5: #{anfis_forward.1} parent=0 // pred_fallthru
    _
  // Predicated region
  $region6: #{anfis_forward.1} parent=0 // pred_check
    _
  $region7: #{anfis_forward.1} parent=0 // pred_check_branch
    %11 = sbr.rel (0) target = $region9
  $region8: #{anfis_forward.1} parent=0 // pred_region
    _
  $region9: #{anfis_forward.1} parent=0 // pred_fallthru
    _
  // Predicated region
  $region10: #{anfis_forward.1} parent=0 // pred_check
    _
  $region11: #{anfis_forward.1} parent=0 // pred_check_branch
    %13 = sbr.rel (0) target = $region13
  $region12: #{anfis_forward.1} parent=0 // pred_region
    _
  $region13: #{anfis_forward.1} parent=0 // pred_fallthru
    _
  %v14 = vld [vmem:[%s0] sm:$0xff]
  %v15 = vld [vmem:[%s0 + $0x8] sm:$0xff]
  %v16 = vld [vmem:[%s1] sm:$0xff]
  %v17 = vld [vmem:[%s1 + $0x8] sm:$0xff]
  %v18 = vld [vmem:[%s1 + $0x10] sm:$0xff]
  %v19 = vld [vmem:[%s1 + $0x18] sm:$0xff]
  %v20 = vld [vmem:[%s2] sm:$0xff]
  %v21 = vld [vmem:[%s2 + $0x8] sm:$0xff]
  %v22 = vld [vmem:[%s2 + $0x10] sm:$0xff]
  %v23 = vld [vmem:[%s2 + $0x18] sm:$0xff]
  %vm24 = vcmask 130048
  %v26 = vsel %vm24, %v16, 0
  %v29 = vsel %vm24, %v17, 0
  %v32 = vsel %vm24, %v18, 0
  %v35 = vsel %vm24, %v19, 0
  %37 = vmatprep.subr.mxu0 0.0
  %38 = vmatpush1.msra.mxu0 0.0
  %39 = vmatprep.subr.mxu0 0.0
  %40 = vmatpush1.msra.mxu0 0.0
  %41 = vmatprep.subr.mxu0 0.0
  %42 = vmatpush1.msra.mxu0 0.0
  %43 = vmatprep.subr.mxu0 0.0
  %44 = vmatpush1.msra.mxu0 0.0
  %45 = vmatprep.subr.mxu0 0.0
  %46 = vmatpush1.msra.mxu0 0.0
  %47 = vmatprep.subr.mxu0 0.0
  %48 = vmatpush1.msra.mxu0 0.0
  %49 = vmatprep.subr.mxu0 0.0
  %50 = vmatpush1.msra.mxu0 0.0
  %51 = vmatprep.subr.mxu0 0.0
  %52 = vmatpush1.msra.mxu0 0.0
  %53 = vmatprep.subr.mxu0 0.0
  %54 = vmatpush1.msra.mxu0 0.0
  %55 = vmatprep.subr.mxu0 0.0
  %56 = vmatpush1.msra.mxu0 0.0
  %57 = vmatprep.subr.mxu0 0.0
  %58 = vmatpush1.msra.mxu0 0.0
  %59 = vmatprep.subr.mxu0 0.0
  %60 = vmatpush1.msra.mxu0 0.0
  %61 = vmatprep.subr.mxu0 0.0
  %62 = vmatpush1.msra.mxu0 0.0
  %63 = vmatprep.subr.mxu0 0.0
  %64 = vmatpush1.msra.mxu0 0.0
  %65 = vmatprep.subr.mxu0 0.0
  %66 = vmatpush1.msra.mxu0 %v15
  %67 = vmatprep.subr.mxu0 0.0
  %68 = vmatpush1.msra.mxu0 %v14
  %69 = vmatprep.subr.mxu0 0.0
  %70 = vmatpush2.msra.mxu0 0.0
  %71 = vmatprep.subr.mxu0 0.0
  %72 = vmatpush2.msra.mxu0 0.0
  %73 = vmatprep.subr.mxu0 0.0
  %74 = vmatpush2.msra.mxu0 0.0
  %75 = vmatprep.subr.mxu0 0.0
  %76 = vmatpush2.msra.mxu0 0.0
  %77 = vmatprep.subr.mxu0 0.0
  %78 = vmatpush2.msra.mxu0 0.0
  %79 = vmatprep.subr.mxu0 0.0
  %80 = vmatpush2.msra.mxu0 0.0
  %81 = vmatprep.subr.mxu0 0.0
  %82 = vmatpush2.msra.mxu0 0.0
  %83 = vmatprep.subr.mxu0 0.0
  %84 = vmatpush2.msra.mxu0 0.0
  %85 = vmatprep.subr.mxu0 0.0
  %86 = vmatpush2.msra.mxu0 0.0
  %87 = vmatprep.subr.mxu0 0.0
  %88 = vmatpush2.msra.mxu0 0.0
  %89 = vmatprep.subr.mxu0 0.0
  %90 = vmatpush2.msra.mxu0 0.0
  %91 = vmatprep.subr.mxu0 0.0
  %92 = vmatpush2.msra.mxu0 0.0
  %93 = vmatprep.subr.mxu0 0.0
  %94 = vmatpush2.msra.mxu0 0.0
  %95 = vmatprep.subr.mxu0 0.0
  %96 = vmatpush2.msra.mxu0 0.0
  %97 = vmatprep.subr.mxu0 0.0
  %98 = vmatpush2.msra.mxu0 0.0
  %99 = vmatprep.subr.mxu0 0.0
  %100 = vmatpush2.msra.mxu0 0.0
  %101 = vmatprep.mubr.f32.mxu0 0.0
  %102 = vmatmul.mubr.f32.gmra.mxu0 %v26
  %v103 = vpop.f32.mrf.mxu0
  %v104 = vadd.f32 0.0, %v103
  %v105 = vpop.f32.mrf.mxu0
  %106 = vmatprep.mubr.f32.mxu0 0.0
  %107 = vmatmul.mubr.f32.gmra.mxu0 %v29
  %v108 = vpop.f32.mrf.mxu0
  %v109 = vadd.f32 0.0, %v108
  %v110 = vpop.f32.mrf.mxu0
  %111 = vmatprep.mubr.f32.mxu0 0.0
  %112 = vmatmul.mubr.f32.gmra.mxu0 %v32
  %v113 = vpop.f32.mrf.mxu0
  %v114 = vadd.f32 0.0, %v113
  %v115 = vpop.f32.mrf.mxu0
  %116 = vmatprep.mubr.f32.mxu0 0.0
  %117 = vmatmul.mubr.f32.gmra.mxu0 %v35
  %v118 = vpop.f32.mrf.mxu0
  %v119 = vadd.f32 0.0, %v118
  %v120 = vpop.f32.mrf.mxu0
  %121 = vdwg.mxu0
  %v122 = vmax.f32 %v104, %v109
  %v123 = vmax.f32 %v114, %v119
  %v124 = vmax.f32 %v122, %v123
  %v125 = vrot.slane %v124, 4
  %v126 = vmax.f32 %v124, %v125
  %v127 = vrot.slane %v126, 2
  %v128 = vmax.f32 %v126, %v127
  %v129 = vrot.slane %v128, 1
  %v130 = vmax.f32 %v128, %v129
  %v131 = vsub.f32 %v104, %v130
  %v132 = vsub.f32 %v109, %v130
  %v133 = vsub.f32 %v114, %v130
  %v134 = vsub.f32 %v119, %v130
  %v135 = vmul.f32 %v131, 1.442695
  %v136 = vpow.pop %v135
  %v137 = vmul.f32 %v132, 1.442695
  %v138 = vpow.pop %v137
  %v139 = vmul.f32 %v133, 1.442695
  %v140 = vpow.pop %v139
  %v141 = vmul.f32 %v134, 1.442695
  %v142 = vpow.pop %v141
  %v143 = vadd.f32 %v136, %v138
  %v144 = vadd.f32 %v143, %v140
  %v145 = vadd.f32 %v144, %v142
  %v146 = vrot.slane %v145, 4
  %v147 = vadd.f32 %v145, %v146
  %v148 = vrot.slane %v147, 2
  %v149 = vadd.f32 %v147, %v148
  %v150 = vrot.slane %v149, 1
  %v151 = vadd.f32 %v149, %v150
  %153 = vset.pattern.permute.xlu0 0
  %154 = vperm.xlu0 %153, %v20
  %v155 = vpop.permute.xlu0 %154
  %158 = vset.pattern.permute.xlu0 0
  %159 = vperm.xlu0 %158, %v21
  %v160 = vpop.permute.xlu0 %159
  %163 = vset.pattern.permute.xlu0 0
  %164 = vperm.xlu0 %163, %v22
  %v165 = vpop.permute.xlu0 %164
  %168 = vset.pattern.permute.xlu0 0
  %169 = vperm.xlu0 %168, %v23
  %v170 = vpop.permute.xlu0 %169
  %v172 = vmul.f32 %v136, %v155
  %v173 = vmul.f32 %v138, %v160
  %v174 = vmul.f32 %v140, %v165
  %v175 = vmul.f32 %v142, %v170
  %v176 = vadd.f32 %v172, %v173
  %v177 = vadd.f32 %v176, %v174
  %v178 = vadd.f32 %v177, %v175
  %v179 = vrot.slane %v178, 4
  %v180 = vadd.f32 %v178, %v179
  %v181 = vrot.slane %v180, 2
  %v182 = vadd.f32 %v180, %v181
  %v183 = vrot.slane %v182, 1
  %v184 = vadd.f32 %v182, %v183
  %v185 = vrcp.pop %v151
  %v186 = vmul.f32 %v184, %v185
  %v187 = vsub.f32 0.0, %v186
  %v188 = vmul.f32 %v187, 1.442695
  %v189 = vpow.pop %v188
  %v190 = vadd.f32 %v189, 1.0
  %v191 = vrcp.pop %v190
  %192 = vst [vmem:[%s3] sm:$0x1] %v191
  // Predicated region
  $region14: #{anfis_forward.1} parent=0 // pred_check
    _
  $region15: #{anfis_forward.1} parent=0 // pred_check_branch
    %194 = sbr.rel (0) target = $region17
  $region16: #{anfis_forward.1} parent=0 // pred_region
    _
  $region17: #{anfis_forward.1} parent=0 // pred_fallthru
    _
  // Predicated region
  $region18: #{anfis_forward.1} parent=0 // pred_check
    _
  $region19: #{anfis_forward.1} parent=0 // pred_check_branch
    %196 = sbr.rel (0) target = $region21
  $region20: #{anfis_forward.1} parent=0 // pred_region
    _
  $region21: #{anfis_forward.1} parent=0 // pred_fallthru
    _

</llo_original>
